<compile_context>
chip_gen: v5e
topology: v5e:2x2
jax: 0.10.0
libtpu: 0.0.40
codegen_flags: <defaults>
</compile_context>

<pallas_src>
import jax
import jax.numpy as jnp
from jax.experimental import pallas as pl
from jax.experimental.pallas import tpu as pltpu

_EPS = 1e-12           # F.normalize eps
_SUBLANE = 8           # f32 sublane height
_MAX_BATCH_TILE = 512  # hot-path batch tile; amortizes ~0.35us/step overhead


def _round_up(x, m):
    return ((x + m - 1) // m) * m


def _class_pad_unit():
    """Class-axis lane pad: 256 fills the 2x256^2 MXU on v6e/v7x, 128 on v5e."""
    try:
        kind = jax.devices()[0].device_kind.lower()
        if "v6" in kind or "v7" in kind:
            return 256
    except Exception:
        pass
    return 128


# --------------------------------------------------------------------------
# Cold path: logits-independent, runs once per parameter update and is cached.
# --------------------------------------------------------------------------
def _prototype_kernel(proto_ref, attn_ref, proto_t_ref):
    """softmax(attention) -> weighted prototypes -> L2-normalize.

    Output is stored transposed and zero-padded along the class axis as
    (D, C_pad), the lane-dense MXU weight layout consumed by the hot path.
    """
    attn = attn_ref[...]                                        # (C, P)
    attn = attn - jnp.max(attn, axis=1, keepdims=True)
    attn_exp = jnp.exp(attn)
    attn_w = attn_exp / jnp.sum(attn_exp, axis=1, keepdims=True)

    proto = proto_ref[...]                                      # (C, P, D)
    weighted = jnp.sum(proto * attn_w[:, :, None], axis=1)      # (C, D)

    # x / max(||x||, eps)  ==  x * rsqrt(max(||x||^2, eps^2))
    sumsq = jnp.sum(weighted * weighted, axis=1, keepdims=True)
    inv = jax.lax.rsqrt(jnp.maximum(sumsq, _EPS * _EPS))
    norm = weighted * inv                                       # (C, D)

    # Zero-pad the class (sublane) axis in-registers: padded rows are all-zero
    # so they contribute cos = 0 and are discarded by the consumer slice.
    c, d = norm.shape
    c_pad = proto_t_ref.shape[1]
    if c_pad != c:
        norm = jnp.concatenate(
            [norm, jnp.zeros((c_pad - c, d), norm.dtype)], axis=0)
    # Single full lane-dense store of the transposed slab.
    proto_t_ref[...] = jnp.transpose(norm).astype(proto_t_ref.dtype)


def precompute_normalized_prototypes(prototype, attention):
    """Call once per parameter update and cache alongside the parameters.

    Returns the normalized, attention-weighted prototypes as (D, C_pad) f32.
    """
    C, P, D = prototype.shape
    C_pad = _round_up(max(C, 1), _class_pad_unit())
    # For production sizes (C*P*D*4B approaching the scoped-VMEM limit,
    # especially v7x's 64 MiB physical / 32 MiB default scoped), grid this
    # call over the class axis with ('parallel',) semantics instead of the
    # gridless single block used here for the small demo shapes.
    return pl.pallas_call(
        _prototype_kernel,
        out_shape=jax.ShapeDtypeStruct((D, C_pad), jnp.float32),
        in_specs=[
            pl.BlockSpec(memory_space=pltpu.MemorySpace.VMEM),
            pl.BlockSpec(memory_space=pltpu.MemorySpace.VMEM),
        ],
        out_specs=pl.BlockSpec(memory_space=pltpu.MemorySpace.VMEM),
    )(prototype, attention)


# --------------------------------------------------------------------------
# Hot path: per-batch cosine distances.
# --------------------------------------------------------------------------
def _cosine_distance_kernel(logits_ref, proto_t_ref, out_ref):
    """MXU matmul first; row-norm rsqrt runs in parallel, applied post-matmul."""
    logits = logits_ref[...]                                    # (TB, D)
    raw = jnp.dot(logits, proto_t_ref[...],
                  preferred_element_type=jnp.float32)           # (TB, C_pad)
    sumsq = jnp.sum(logits * logits, axis=1, keepdims=True)     # XLU reduce
    inv = jax.lax.rsqrt(jnp.maximum(sumsq, _EPS * _EPS))        # EUP rsqrt
    out_ref[...] = (1.0 - raw * inv).astype(out_ref.dtype)


def cosine_distances(logits, proto_t_padded):
    """logits [B, D] x proto_t [D, C_pad] -> padded distances [B_pad, C_pad].

    Returns the padded result; slice back to (B, num_class) at the consumer
    (keeps the hot path free of a per-call HBM copy).
    """
    B, D = logits.shape
    C_pad = proto_t_padded.shape[1]

    # Keep the logits load and the output store full-sublane (unmasked vst).
    tb = min(_MAX_BATCH_TILE, _round_up(B, _SUBLANE))
    B_pad = _round_up(B, tb)
    if B_pad != B:
        logits = jnp.pad(logits, ((0, B_pad - B), (0, 0)))

    return pl.pallas_call(
        _cosine_distance_kernel,
        out_shape=jax.ShapeDtypeStruct((B_pad, C_pad), jnp.float32),
        grid_spec=pltpu.PrefetchScalarGridSpec(
            num_scalar_prefetch=0,
            grid=(B_pad // tb,),
            in_specs=[
                pl.BlockSpec((tb, D), lambda i: (i, 0)),      # batch tile
                pl.BlockSpec((D, C_pad), lambda i: (0, 0)),   # resident weights
            ],
            out_specs=pl.BlockSpec((tb, C_pad), lambda i: (i, 0)),
        ),
        compiler_params=pltpu.CompilerParams(
            dimension_semantics=("parallel",)),
    )(logits, proto_t_padded)


def class_prototypes_forward(logits, prototype, attention):
    """Full module forward: logits [B, D] -> cosine distances [B, num_class]."""
    proto_t = precompute_normalized_prototypes(prototype, attention)
    dist_padded = cosine_distances(logits, proto_t)
    # Consumer-side slice back to the real (B, num_class) result.
    return dist_padded[:logits.shape[0], :prototype.shape[0]]


def reference_forward(logits, prototype, attention):
    """Pure-JAX reference for correctness check."""
    attn_w = jax.nn.softmax(attention, axis=1)
    wp = jnp.einsum('ijk,ij->ik', prototype, attn_w)
    ln = logits / jnp.maximum(
        jnp.linalg.norm(logits, axis=1, keepdims=True), 1e-12)
    wpn = wp / jnp.maximum(jnp.linalg.norm(wp, axis=1, keepdims=True), 1e-12)
    return 1.0 - ln @ wpn.T


if __name__ == "__main__":
    key = jax.random.PRNGKey(0)
    k_logits, k_proto, k_attn = jax.random.split(key, 3)

    B = 8            # batch of logits
    num_class = 4
    num_prototypes = 3
    dim = 32

    logits = jax.random.normal(k_logits, (B, dim), dtype=jnp.float32)
    prototype = jax.random.normal(
        k_proto, (num_class, num_prototypes, dim), dtype=jnp.float32)
    attention = jax.random.normal(
        k_attn, (num_class, num_prototypes), dtype=jnp.float32)

    out = class_prototypes_forward(logits, prototype, attention)
    out = jax.block_until_ready(out)

    ref = reference_forward(logits, prototype, attention)
    assert out.shape == (B, num_class), out.shape
    max_err = jnp.max(jnp.abs(out - ref))
    assert jnp.allclose(out, ref, atol=1e-5, rtol=1e-5), (
        f"max abs err {max_err}")

    print("KERNEL_OK")
</pallas_src>

<mosaic_0001>
module attributes {stable_mosaic.version = 11 : i64} {
  func.func @_prototype_kernel(%arg0: memref<4x3x32xf32, #tpu.memory_space<vmem>>, %arg1: memref<4x3xf32, #tpu.memory_space<vmem>>, %arg2: memref<32x128xf32, #tpu.memory_space<vmem>>) attributes {dimension_semantics = [], scalar_prefetch = 0 : i64, scratch_operands = 0 : i64, tpu.core_type = #tpu.core_type<tc>} {
    %c0 = arith.constant 0 : index
    %c0_0 = arith.constant 0 : index
    %0 = vector.load %arg1[%c0, %c0_0] : memref<4x3xf32, #tpu.memory_space<vmem>>, vector<4x3xf32>
    %cst = arith.constant dense<0xFF800000> : vector<4xf32>
    %1 = vector.multi_reduction <maximumf>, %0, %cst [1] : vector<4x3xf32> to vector<4xf32>
    %2 = vector.shape_cast %1 : vector<4xf32> to vector<4x1xf32>
    %3 = vector.broadcast %2 : vector<4x1xf32> to vector<4x3xf32>
    %4 = arith.subf %0, %3 : vector<4x3xf32>
    %5 = math.exp %4 : vector<4x3xf32>
    %cst_1 = arith.constant dense<0.000000e+00> : vector<4xf32>
    %6 = vector.multi_reduction <add>, %5, %cst_1 [1] : vector<4x3xf32> to vector<4xf32>
    %7 = vector.shape_cast %6 : vector<4xf32> to vector<4x1xf32>
    %8 = vector.broadcast %7 : vector<4x1xf32> to vector<4x3xf32>
    %9 = arith.divf %5, %8 : vector<4x3xf32>
    %c0_2 = arith.constant 0 : index
    %c0_3 = arith.constant 0 : index
    %c0_4 = arith.constant 0 : index
    %10 = vector.load %arg0[%c0_2, %c0_3, %c0_4] : memref<4x3x32xf32, #tpu.memory_space<vmem>>, vector<4x3x32xf32>
    %11 = vector.shape_cast %9 : vector<4x3xf32> to vector<4x3x1xf32>
    %12 = vector.broadcast %11 : vector<4x3x1xf32> to vector<4x3x32xf32>
    %13 = arith.mulf %10, %12 : vector<4x3x32xf32>
    %cst_5 = arith.constant dense<0.000000e+00> : vector<4x32xf32>
    %14 = vector.multi_reduction <add>, %13, %cst_5 [1] : vector<4x3x32xf32> to vector<4x32xf32>
    %15 = arith.mulf %14, %14 : vector<4x32xf32>
    %cst_6 = arith.constant dense<0.000000e+00> : vector<4xf32>
    %16 = vector.multi_reduction <add>, %15, %cst_6 [1] : vector<4x32xf32> to vector<4xf32>
    %17 = vector.shape_cast %16 : vector<4xf32> to vector<4x1xf32>
    %cst_7 = arith.constant 1.000000e-24 : f32
    %18 = vector.broadcast %cst_7 : f32 to vector<4x1xf32>
    %19 = arith.maximumf %17, %18 : vector<4x1xf32>
    %20 = math.rsqrt %19 : vector<4x1xf32>
    %21 = vector.broadcast %20 : vector<4x1xf32> to vector<4x32xf32>
    %22 = arith.mulf %14, %21 : vector<4x32xf32>
    %cst_8 = arith.constant 0.000000e+00 : f32
    %23 = vector.broadcast %cst_8 : f32 to vector<124x32xf32>
    %24 = tpu.concatenate %22, %23 in 0 : vector<4x32xf32>, vector<124x32xf32> -> vector<128x32xf32>
    %25 = tpu.transpose %24, [1, 0] : vector<128x32xf32> -> vector<32x128xf32>
    %c0_9 = arith.constant 0 : index
    %c0_10 = arith.constant 0 : index
    %26 = vector.load %arg2[%c0_9, %c0_10] : memref<32x128xf32, #tpu.memory_space<vmem>>, vector<32x128xf32>
    tpu.vector_store %arg2[%c0_9, %c0_10], %25 {strides = array<i32>} : memref<32x128xf32, #tpu.memory_space<vmem>>, vector<32x128xf32>,
    return
  }
}

</mosaic_0001>

<llo_original>
// kernel: tpu_custom_call.1
$region0: #{tpu_custom_call.1}
  #allocation0 [shape = 'u32[]', space=smem, size = 0x4, offset = 0x4, fixed_abs, tag = 'smem constant byte address 0x4 - core index']
  #allocation1 [shape = 'u32[72,128]{1,0:T(1,128)}', space=vmem, size = 0x9000, scoped, tag = 'internal scratch']
  %s0 = inlined_call_operand.vmem [shape: f32[4,3,32], index: 0, kind: input, shape index: {}]
  %s1 = inlined_call_operand.vmem [shape: f32[4,3], index: 1, kind: input, shape index: {}]
  %s2 = inlined_call_operand.hbm [shape: f32[32,128], index: 2, kind: output, shape index: {}]
  %s3 = sld [smem:[#allocation0]]
  $region18: #{tpu_custom_call.1} parent=0
    _
  %s5 = ssub.s32 1, %s3
  %s6 = scalar_select 0, %s5, %s3
  $region1: #{tpu_custom_call.1} parent=0
    #allocation2 [shape = 'u8[16384]{0}', space=vmem, size = 0x4000, scoped, tag = 'output window, operand 0, single buffered']
    #allocation3 [shape = 's32[1]{0}', space=sflag, size = 0x4, scoped, tag = 'scoped memory for tpu_custom_call.1']
    %7 = vsyncpa [#allocation3], 0
    // Predicated region
    $region2: #{tpu_custom_call.1} parent=1 // pred_check
      _
    $region3: #{tpu_custom_call.1} parent=1 // pred_check_branch
      %9 = sbr.rel (0) target = $region5
    $region4: #{tpu_custom_call.1} parent=1 // pred_region
      _
    $region5: #{tpu_custom_call.1} parent=1 // pred_fallthru
      _
    // Predicated region
    $region6: #{tpu_custom_call.1} parent=1 // pred_check
      _
    $region7: #{tpu_custom_call.1} parent=1 // pred_check_branch
      %11 = sbr.rel (0) target = $region9
    $region8: #{tpu_custom_call.1} parent=1 // pred_region
      _
    $region9: #{tpu_custom_call.1} parent=1 // pred_fallthru
      _
    %v12 = vld [vmem:[%s1] sm:$0xf]
    %vm13 = vcmask 19456
    %v14 = vsel %vm13, %v12, -inf
    %15 = vmax.xlane.f32.xlu0 %v14
    %v16 = vpop.xlane.xlu0 %15
    %v17 = vsub.f32 %v12, %v16
    %v18 = vmul.f32 %v17, 1.442695
    %v19 = vpow.pop %v18
    %v20 = vsel %vm13, %v19, 0.0
    %21 = vadd.xlane.f32.xlu0 %v20
    %v22 = vpop.xlane.xlu0 %21
    %v23 = vrcp.pop %v22
    %v24 = vmul.f32 %v22, %v23
    %v25 = vsub.f32 1.0, %v24
    %v26 = vmul.f32 %v23, %v25
    %v27 = vadd.f32 %v23, %v26
    %vm28 = vweird.f32 %v22
    %vm29 = vweird.f32 %v23
    %vm30 = vmor %vm28, %vm29
    %v31 = vsel %vm30, %v23, %v27
    %v32 = vand.u32 2147483647, %v22
    %vm33 = vcmp.eq.f32.partialorder %v32, 8.507059e+37
    %v34 = vand.u32 %v22, 2147483648
    %v35 = vor.u32 1.1754944e-38, %v34
    %v36 = vsel %vm33, %v35, %v31
    %v37 = vmul.f32 %v19, %v36
    %v38 = vld [vmem:[%s0] sm:$0x7]
    %v39 = vld [vmem:[%s0 + $0x4] sm:$0x7]
    %v40 = vld [vmem:[%s0 + $0x8] sm:$0x7]
    %v41 = vld [vmem:[%s0 + $0xc] sm:$0x7]
    %v42 = vperm.slane %v37, 0
    %v43 = vlaneseq
    %v44 = vshrl.u32 %v43, 7
    %46 = vset.pattern.permute.xlu0 %v44
    %47 = vperm.xlu0 %46, %v42
    %v48 = vpop.permute.xlu0 %47
    %v49 = vperm.slane %v37, 1
    %v50 = vlaneseq
    %v51 = vshrl.u32 %v50, 7
    %53 = vset.pattern.permute.xlu0 %v51
    %54 = vperm.xlu0 %53, %v49
    %v55 = vpop.permute.xlu0 %54
    %v56 = vperm.slane %v37, 2
    %v57 = vlaneseq
    %v58 = vshrl.u32 %v57, 7
    %60 = vset.pattern.permute.xlu0 %v58
    %61 = vperm.xlu0 %60, %v56
    %v62 = vpop.permute.xlu0 %61
    %v63 = vperm.slane %v37, 3
    %v64 = vlaneseq
    %v65 = vshrl.u32 %v64, 7
    %67 = vset.pattern.permute.xlu0 %v65
    %68 = vperm.xlu0 %67, %v63
    %v69 = vpop.permute.xlu0 %68
    %v70 = vmul.f32 %v38, %v48
    %v71 = vmul.f32 %v39, %v55
    %v72 = vmul.f32 %v40, %v62
    %v73 = vmul.f32 %v41, %v69
    %vm74 = vcmask 256000
    %v75 = vsel %vm74, %v70, 0.0
    %v76 = vrot.slane %v75, 4
    %v77 = vadd.f32 %v75, %v76
    %v78 = vrot.slane %v77, 2
    %v79 = vadd.f32 %v77, %v78
    %v80 = vrot.slane %v79, 1
    %v81 = vadd.f32 %v79, %v80
    %v82 = vsel %vm74, %v71, 0.0
    %v83 = vrot.slane %v82, 4
    %v84 = vadd.f32 %v82, %v83
    %v85 = vrot.slane %v84, 2
    %v86 = vadd.f32 %v84, %v85
    %v87 = vrot.slane %v86, 1
    %v88 = vadd.f32 %v86, %v87
    %v89 = vsel %vm74, %v72, 0.0
    %v90 = vrot.slane %v89, 4
    %v91 = vadd.f32 %v89, %v90
    %v92 = vrot.slane %v91, 2
    %v93 = vadd.f32 %v91, %v92
    %v94 = vrot.slane %v93, 1
    %v95 = vadd.f32 %v93, %v94
    %v96 = vsel %vm74, %v73, 0.0
    %v97 = vrot.slane %v96, 4
    %v98 = vadd.f32 %v96, %v97
    %v99 = vrot.slane %v98, 2
    %v100 = vadd.f32 %v98, %v99
    %v101 = vrot.slane %v100, 1
    %v102 = vadd.f32 %v100, %v101
    %v103 = vmul.f32 %v81, %v81
    %v104 = vmul.f32 %v88, %v88
    %v105 = vmul.f32 %v95, %v95
    %v106 = vmul.f32 %v102, %v102
    %vm111 = vcmask 1041409
    %v112 = vsel %vm111, %v104, %v103
    %vm113 = vcmask 1042434
    %v114 = vsel %vm113, %v105, %v112
    %vm115 = vcmask 1043459
    %v116 = vsel %vm115, %v106, %v114
    %vm118 = vcmask 257024
    %v119 = vsel %vm118, %v116, 0.0
    %120 = vadd.xlane.f32.xlu0 %v119
    %v121 = vpop.xlane.xlu0 %120
    %v122 = vmax.f32 %v121, 1e-24
    %v123 = vrsqrt.pop %v122
    %v124 = vmul.f32 %v123, %v122
    %v125 = vmul.f32 %v124, %v123
    %v126 = vmul.f32 0.5, %v125
    %v127 = vsub.f32 1.5, %v126
    %v128 = vmul.f32 %v123, %v127
    %vm129 = vweird.f32 %v122
    %vm130 = vweird.f32 %v123
    %vm131 = vmor %vm129, %vm130
    %v132 = vsel %vm131, %v123, %v128
    %v134 = vrot.slane %v132, 1
    %v135 = vrot.slane %v132, 2
    %v136 = vrot.slane %v132, 3
    %v141 = vmul.f32 %v81, %v132
    %v142 = vmul.f32 %v88, %v134
    %v143 = vmul.f32 %v95, %v135
    %v144 = vmul.f32 %v102, %v136
    %v149 = vrot.slane %v142, 7
    %v150 = vsel %vm111, %v149, %v141
    %v151 = vrot.slane %v143, 6
    %v152 = vsel %vm113, %v151, %v150
    %v153 = vrot.slane %v144, 5
    %v154 = vsel %vm115, %v153, %v152
    %vm156 = vcmask 1043456
    %v157 = vsel %vm156, %v154, 0.0
    %158 = vxpose.xlu0.b32.start [1/16] %v157, 128
    %159 = vxpose.xlu0.b32.cont [2/16] 0.0, 128
    %160 = vxpose.xlu0.b32.cont [3/16] 0.0, 128
    %161 = vxpose.xlu0.b32.cont [4/16] 0.0, 128
    %162 = vxpose.xlu0.b32.cont [5/16] 0.0, 128
    %163 = vxpose.xlu0.b32.cont [6/16] 0.0, 128
    %164 = vxpose.xlu0.b32.cont [7/16] 0.0, 128
    %165 = vxpose.xlu0.b32.cont [8/16] 0.0, 128
    %166 = vxpose.xlu0.b32.cont [9/16] 0.0, 128
    %167 = vxpose.xlu0.b32.cont [10/16] 0.0, 128
    %168 = vxpose.xlu0.b32.cont [11/16] 0.0, 128
    %169 = vxpose.xlu0.b32.cont [12/16] 0.0, 128
    %170 = vxpose.xlu0.b32.cont [13/16] 0.0, 128
    %171 = vxpose.xlu0.b32.cont [14/16] 0.0, 128
    %172 = vxpose.xlu0.b32.cont [15/16] 0.0, 128
    %173 = vxpose.xlu0.b32.end [16/16] 0.0, 128
    %v174 = vpop.trf.xlu0
    %v175 = vpop.trf.xlu0
    %v176 = vpop.trf.xlu0
    %v177 = vpop.trf.xlu0
    %v178 = vpop.trf.xlu0
    %v179 = vpop.trf.xlu0
    %v180 = vpop.trf.xlu0
    %v181 = vpop.trf.xlu0
    %v182 = vpop.trf.xlu0
    %v183 = vpop.trf.xlu0
    %v184 = vpop.trf.xlu0
    %v185 = vpop.trf.xlu0
    %v186 = vpop.trf.xlu0
    %v187 = vpop.trf.xlu0
    %v188 = vpop.trf.xlu0
    %v189 = vpop.trf.xlu0
    %190 = vst [vmem:[#allocation2] sm:$0xff] %v174
    %191 = vst [vmem:[#allocation2 + $0x8] sm:$0xff] %v175
    %192 = vst [vmem:[#allocation2 + $0x10] sm:$0xff] %v176
    %193 = vst [vmem:[#allocation2 + $0x18] sm:$0xff] %v177
    // Predicated region
    $region10: #{tpu_custom_call.1} parent=1 // pred_check
      _
    $region11: #{tpu_custom_call.1} parent=1 // pred_check_branch
      %195 = sbr.rel (0) target = $region13
    $region12: #{tpu_custom_call.1} parent=1 // pred_region
      %197 = vsyncadd [#allocation3], 0
      %s198 = sshll.u32 [#allocation2], 4
      %s199 = int_to_ptr.vmem [resolvable:$true] %s198
      %s200 = sshll.u32 %s2, 4
      %s201 = int_to_ptr.hbm [resolvable:$true] %s200
      %206 = dma.vmem_to_hbm [thread:$0]  %s199, 512, %s201, [#allocation3], 128, 128, 8
    $region13: #{tpu_custom_call.1} parent=1 // pred_fallthru
      _
    // Predicated region
    $region14: #{tpu_custom_call.1} parent=1 // pred_check
      _
    $region15: #{tpu_custom_call.1} parent=1 // pred_check_branch
      %208 = sbr.rel (0) target = $region17
    $region16: #{tpu_custom_call.1} parent=1 // pred_region
      %210 = dma.done [#allocation3], 512
    $region17: #{tpu_custom_call.1} parent=1 // pred_fallthru
      _
    %211 = vsyncpa [#allocation3], 1

</llo_original>
